<compile_context>
chip_gen: v6e
topology: v6e:2x2x1
jax: 0.10.0
libtpu: 0.0.40
codegen_flags: <defaults>
</compile_context>

<pallas_src>
import functools

import jax
import jax.numpy as jnp
from jax.experimental import pallas as pl
from jax.experimental.pallas import tpu as pltpu


def _round_up(x, m):
    return (x + m - 1) // m * m


def _pad2(x, rows, cols):
    r, c = x.shape
    return jnp.pad(x, ((0, rows - r), (0, cols - c)))


def mlp_g_kernel(noise_ref, att_ref, w1n_ref, w1a_ref, b1_ref, w2_ref, b2_ref, o_ref):
    # fc1: split-W accumulate (equivalent to cat(noise, att) @ W1), bf16 MXU
    # dots with f32 accumulation, then bias add in f32.
    z1 = jnp.dot(noise_ref[...], w1n_ref[...], preferred_element_type=jnp.float32)
    z1 = z1 + jnp.dot(att_ref[...], w1a_ref[...], preferred_element_type=jnp.float32)
    z1 = z1 + b1_ref[...]
    # LeakyReLU(0.2) in f32, recast to bf16 for the second MXU dot.
    a1 = jnp.where(z1 > 0, z1, 0.2 * z1).astype(jnp.bfloat16)
    # fc2 + ReLU
    z2 = jnp.dot(a1, w2_ref[...], preferred_element_type=jnp.float32) + b2_ref[...]
    o_ref[...] = jnp.maximum(z2, 0.0).astype(o_ref.dtype)


@functools.partial(jax.jit, static_argnames=("tb_max",))
def mlp_g_forward(noise, att, params, *, tb_max=256):
    """noise: [B_noise, nz], att: [B_att, attSize] -> [B_att, resSize] (f32)."""
    w1, b1, w2, b2 = params          # w1: [nz+attSize, ngh], w2: [ngh, resSize]
    B = att.shape[0]
    noise = noise[:B, :]             # glue: batch-slice noise to att's batch
    nz = noise.shape[1]
    att_size = att.shape[1]
    ngh = w1.shape[1]
    res_size = w2.shape[1]

    # Split fc1 weight (concat order in the original forward is (noise, att)).
    w1n = w1[:nz, :]
    w1a = w1[nz:, :]

    # Padded / aligned dimensions.
    nz_p = _round_up(nz, 128)
    att_p = _round_up(att_size, 128)
    ngh_p = _round_up(ngh, 128)
    res_p = _round_up(res_size, 128)
    TB = min(tb_max, _round_up(B, 16))
    B_p = _round_up(B, TB)

    bf16, f32 = jnp.bfloat16, jnp.float32
    noise_p = _pad2(noise.astype(bf16), B_p, nz_p)
    att_pd = _pad2(att.astype(bf16), B_p, att_p)
    w1n_p = _pad2(w1n.astype(bf16), nz_p, ngh_p)
    w1a_p = _pad2(w1a.astype(bf16), att_p, ngh_p)
    w2_p = _pad2(w2.astype(bf16), ngh_p, res_p)
    b1_p = _pad2(b1.reshape(1, -1).astype(f32), 1, ngh_p)
    b2_p = _pad2(b2.reshape(1, -1).astype(f32), 1, res_p)

    grid = (B_p // TB,)

    # Advisory cost estimate so XLA can overlap surrounding ops.
    flops = 2 * B_p * (nz_p * ngh_p + att_p * ngh_p + ngh_p * res_p)
    bytes_accessed = (
        (noise_p.size + att_pd.size + w1n_p.size + w1a_p.size + w2_p.size) * 2
        + (b1_p.size + b2_p.size) * 4
        + B_p * res_p * 4
    )
    cost = pl.CostEstimate(flops=flops, transcendentals=0,
                           bytes_accessed=bytes_accessed)

    # VMEM budget: double-buffered weights + activation tiles + f32 intermediates.
    vmem_est = 2 * (
        (w1n_p.size + w1a_p.size + w2_p.size) * 2
        + (b1_p.size + b2_p.size) * 4
        + TB * (nz_p + att_p) * 2
        + TB * res_p * 4
    ) + 2 * TB * ngh_p * 4
    vmem_limit = int(min(max(2 * vmem_est, 16 << 20), 96 << 20))

    out_p = pl.pallas_call(
        mlp_g_kernel,
        out_shape=jax.ShapeDtypeStruct((B_p, res_p), jnp.float32),
        grid_spec=pltpu.PrefetchScalarGridSpec(
            num_scalar_prefetch=0,
            grid=grid,
            in_specs=[
                pl.BlockSpec((TB, nz_p), lambda i: (i, 0)),     # noise tile (pipelined)
                pl.BlockSpec((TB, att_p), lambda i: (i, 0)),    # att tile   (pipelined)
                pl.BlockSpec((nz_p, ngh_p), lambda i: (0, 0)),  # W1_noise   (resident)
                pl.BlockSpec((att_p, ngh_p), lambda i: (0, 0)), # W1_att     (resident)
                pl.BlockSpec((1, ngh_p), lambda i: (0, 0)),     # b1         (resident)
                pl.BlockSpec((ngh_p, res_p), lambda i: (0, 0)), # W2         (resident)
                pl.BlockSpec((1, res_p), lambda i: (0, 0)),     # b2         (resident)
            ],
            out_specs=pl.BlockSpec((TB, res_p), lambda i: (i, 0)),
        ),
        compiler_params=pltpu.CompilerParams(
            dimension_semantics=("parallel",),
            vmem_limit_bytes=vmem_limit,
        ),
        cost_estimate=cost,
    )(noise_p, att_pd, w1n_p, w1a_p, b1_p, w2_p, b2_p)

    # Strip batch / feature padding.
    return out_p[:B, :res_size]


def init_params(key, att_size, nz, ngh, res_size):
    """Mimics weights_init: Linear weight ~ N(0, 0.02), bias = 0."""
    k1, k2 = jax.random.split(key)
    # stored as [in, out] (transpose of PyTorch's [out, in])
    w1 = 0.02 * jax.random.normal(k1, (nz + att_size, ngh), dtype=jnp.float32)
    b1 = jnp.zeros((1, ngh), dtype=jnp.float32)
    w2 = 0.02 * jax.random.normal(k2, (ngh, res_size), dtype=jnp.float32)
    b2 = jnp.zeros((1, res_size), dtype=jnp.float32)
    return w1, b1, w2, b2


if __name__ == "__main__":
    # small opt-equivalent hyperparams
    att_size, nz, ngh, res_size = 16, 16, 32, 64
    b_noise, b_att = 6, 4  # noise batch larger than att batch to exercise slicing

    key = jax.random.PRNGKey(0)
    k_p, k_n, k_a = jax.random.split(key, 3)

    params = init_params(k_p, att_size, nz, ngh, res_size)
    noise = jax.random.normal(k_n, (b_noise, nz), dtype=jnp.float32)
    att = jax.random.normal(k_a, (b_att, att_size), dtype=jnp.float32)

    out = mlp_g_forward(noise, att, params)
    out = jax.block_until_ready(out)

    # reference check (matmuls with bf16 inputs / f32 accumulation, like the kernel)
    w1, b1, w2, b2 = params
    bf16 = jnp.bfloat16
    h = jnp.concatenate(
        [noise[:b_att].astype(bf16), att.astype(bf16)], axis=1)
    z1 = jnp.dot(h, w1.astype(bf16), preferred_element_type=jnp.float32) + b1
    a1 = jnp.where(z1 > 0, z1, 0.2 * z1)
    z2 = jnp.dot(a1.astype(bf16), w2.astype(bf16),
                 preferred_element_type=jnp.float32) + b2
    ref = jnp.maximum(z2, 0.0)

    assert out.shape == (b_att, res_size)
    assert out.dtype == jnp.float32
    assert jnp.allclose(out, ref, atol=2e-2, rtol=2e-2)

    print("KERNEL_OK")
</pallas_src>

<mosaic_0001>
module attributes {stable_mosaic.version = 11 : i64} {
  func.func @mlp_g_kernel(%arg0: i32, %arg1: memref<16x128xbf16, #tpu.memory_space<vmem>>, %arg2: memref<16x128xbf16, #tpu.memory_space<vmem>>, %arg3: memref<128x128xbf16, #tpu.memory_space<vmem>>, %arg4: memref<128x128xbf16, #tpu.memory_space<vmem>>, %arg5: memref<1x128xf32, #tpu.memory_space<vmem>>, %arg6: memref<128x128xbf16, #tpu.memory_space<vmem>>, %arg7: memref<1x128xf32, #tpu.memory_space<vmem>>, %arg8: memref<16x128xf32, #tpu.memory_space<vmem>>) attributes {dimension_semantics = [#tpu.dimension_semantics<parallel>], iteration_bounds = array<i64: 1>, scalar_prefetch = 0 : i64, scratch_operands = 0 : i64, tpu.core_type = #tpu.core_type<tc>, window_params = [{transform_indices = @transform_0, window_bounds = array<i64: 16, 128>}, {transform_indices = @transform_1, window_bounds = array<i64: 16, 128>}, {pipeline_mode = #tpu.pipeline_mode<synchronous>, transform_indices = @transform_2, window_bounds = array<i64: 128, 128>}, {pipeline_mode = #tpu.pipeline_mode<synchronous>, transform_indices = @transform_3, window_bounds = array<i64: 128, 128>}, {pipeline_mode = #tpu.pipeline_mode<synchronous>, transform_indices = @transform_4, window_bounds = array<i64: 1, 128>}, {pipeline_mode = #tpu.pipeline_mode<synchronous>, transform_indices = @transform_5, window_bounds = array<i64: 128, 128>}, {pipeline_mode = #tpu.pipeline_mode<synchronous>, transform_indices = @transform_6, window_bounds = array<i64: 1, 128>}, {transform_indices = @transform_7, window_bounds = array<i64: 16, 128>}]} {
    %c0 = arith.constant 0 : index
    %c0_0 = arith.constant 0 : index
    %0 = vector.load %arg1[%c0, %c0_0] : memref<16x128xbf16, #tpu.memory_space<vmem>>, vector<16x128xbf16>
    %c0_1 = arith.constant 0 : index
    %c0_2 = arith.constant 0 : index
    %1 = vector.load %arg3[%c0_1, %c0_2] : memref<128x128xbf16, #tpu.memory_space<vmem>>, vector<128x128xbf16>
    %cst = arith.constant dense<0.000000e+00> : vector<16x128xf32>
    %2 = tpu.matmul %0, %1, %cst {dimension_numbers = #tpu.dot_dimension_numbers<[1], [0], [0], [1], [0, 0, 1, 1], [], []>} : vector<16x128xbf16>, vector<128x128xbf16>, vector<16x128xf32> -> vector<16x128xf32>
    %c0_3 = arith.constant 0 : index
    %c0_4 = arith.constant 0 : index
    %3 = vector.load %arg2[%c0_3, %c0_4] : memref<16x128xbf16, #tpu.memory_space<vmem>>, vector<16x128xbf16>
    %c0_5 = arith.constant 0 : index
    %c0_6 = arith.constant 0 : index
    %4 = vector.load %arg4[%c0_5, %c0_6] : memref<128x128xbf16, #tpu.memory_space<vmem>>, vector<128x128xbf16>
    %cst_7 = arith.constant dense<0.000000e+00> : vector<16x128xf32>
    %5 = tpu.matmul %3, %4, %cst_7 {dimension_numbers = #tpu.dot_dimension_numbers<[1], [0], [0], [1], [0, 0, 1, 1], [], []>} : vector<16x128xbf16>, vector<128x128xbf16>, vector<16x128xf32> -> vector<16x128xf32>
    %6 = arith.addf %2, %5 : vector<16x128xf32>
    %c0_8 = arith.constant 0 : index
    %c0_9 = arith.constant 0 : index
    %7 = vector.load %arg5[%c0_8, %c0_9] : memref<1x128xf32, #tpu.memory_space<vmem>>, vector<1x128xf32>
    %8 = vector.broadcast %7 : vector<1x128xf32> to vector<16x128xf32>
    %9 = arith.addf %6, %8 : vector<16x128xf32>
    %cst_10 = arith.constant 0.000000e+00 : f32
    %10 = vector.broadcast %cst_10 : f32 to vector<16x128xf32>
    %11 = arith.cmpf ogt, %9, %10 : vector<16x128xf32>
    %cst_11 = arith.constant 2.000000e-01 : f32
    %12 = vector.broadcast %cst_11 : f32 to vector<16x128xf32>
    %13 = arith.mulf %12, %9 : vector<16x128xf32>
    %14 = arith.select %11, %9, %13 : vector<16x128xi1>, vector<16x128xf32>
    %15 = arith.truncf %14 : vector<16x128xf32> to vector<16x128xbf16>
    %c0_12 = arith.constant 0 : index
    %c0_13 = arith.constant 0 : index
    %16 = vector.load %arg6[%c0_12, %c0_13] : memref<128x128xbf16, #tpu.memory_space<vmem>>, vector<128x128xbf16>
    %cst_14 = arith.constant dense<0.000000e+00> : vector<16x128xf32>
    %17 = tpu.matmul %15, %16, %cst_14 {dimension_numbers = #tpu.dot_dimension_numbers<[1], [0], [0], [1], [0, 0, 1, 1], [], []>} : vector<16x128xbf16>, vector<128x128xbf16>, vector<16x128xf32> -> vector<16x128xf32>
    %c0_15 = arith.constant 0 : index
    %c0_16 = arith.constant 0 : index
    %18 = vector.load %arg7[%c0_15, %c0_16] : memref<1x128xf32, #tpu.memory_space<vmem>>, vector<1x128xf32>
    %19 = vector.broadcast %18 : vector<1x128xf32> to vector<16x128xf32>
    %20 = arith.addf %17, %19 : vector<16x128xf32>
    %cst_17 = arith.constant 0.000000e+00 : f32
    %21 = vector.broadcast %cst_17 : f32 to vector<16x128xf32>
    %22 = arith.maximumf %20, %21 : vector<16x128xf32>
    %c0_18 = arith.constant 0 : index
    %c0_19 = arith.constant 0 : index
    %23 = vector.load %arg8[%c0_18, %c0_19] : memref<16x128xf32, #tpu.memory_space<vmem>>, vector<16x128xf32>
    tpu.vector_store %arg8[%c0_18, %c0_19], %22 {strides = array<i32>} : memref<16x128xf32, #tpu.memory_space<vmem>>, vector<16x128xf32>,
    return
  }
  func.func @transform_0(%arg0: i32) -> (i32, i32) {
    %c0_i32 = arith.constant 0 : i32
    %c0_i32_0 = arith.constant 0 : i32
    return %arg0, %c0_i32 : i32, i32
  }
  func.func @transform_1(%arg0: i32) -> (i32, i32) {
    %c0_i32 = arith.constant 0 : i32
    %c0_i32_0 = arith.constant 0 : i32
    return %arg0, %c0_i32 : i32, i32
  }
  func.func @transform_2(%arg0: i32) -> (i32, i32) {
    %c0_i32 = arith.constant 0 : i32
    %c0_i32_0 = arith.constant 0 : i32
    %c0_i32_1 = arith.constant 0 : i32
    return %c0_i32, %c0_i32_0 : i32, i32
  }
  func.func @transform_3(%arg0: i32) -> (i32, i32) {
    %c0_i32 = arith.constant 0 : i32
    %c0_i32_0 = arith.constant 0 : i32
    %c0_i32_1 = arith.constant 0 : i32
    return %c0_i32, %c0_i32_0 : i32, i32
  }
  func.func @transform_4(%arg0: i32) -> (i32, i32) {
    %c0_i32 = arith.constant 0 : i32
    %c0_i32_0 = arith.constant 0 : i32
    %c0_i32_1 = arith.constant 0 : i32
    return %c0_i32, %c0_i32_0 : i32, i32
  }
  func.func @transform_5(%arg0: i32) -> (i32, i32) {
    %c0_i32 = arith.constant 0 : i32
    %c0_i32_0 = arith.constant 0 : i32
    %c0_i32_1 = arith.constant 0 : i32
    return %c0_i32, %c0_i32_0 : i32, i32
  }
  func.func @transform_6(%arg0: i32) -> (i32, i32) {
    %c0_i32 = arith.constant 0 : i32
    %c0_i32_0 = arith.constant 0 : i32
    %c0_i32_1 = arith.constant 0 : i32
    return %c0_i32, %c0_i32_0 : i32, i32
  }
  func.func @transform_7(%arg0: i32) -> (i32, i32) {
    %c0_i32 = arith.constant 0 : i32
    %c0_i32_0 = arith.constant 0 : i32
    return %arg0, %c0_i32 : i32, i32
  }
}

</mosaic_0001>

<llo_original>
// kernel: mlp_g_forward.1
$region0: #{mlp_g_forward.1}
  #allocation0 [shape = 'u32[]', space=smem, size = 0x4, offset = 0x4, fixed_abs, tag = 'smem constant byte address 0x4 - core index']
  #allocation1 [shape = 'u32[144,128]{1,0:T(1,128)}', space=vmem, size = 0x12000, scoped, tag = 'internal scratch']
  %s0 = inlined_call_operand.vmem [shape: bf16[16,128], index: 0, kind: input, shape index: {}]
  %s1 = inlined_call_operand.vmem [shape: bf16[16,128], index: 1, kind: input, shape index: {}]
  %s2 = inlined_call_operand.vmem [shape: bf16[128,128], index: 2, kind: input, shape index: {}]
  %s3 = inlined_call_operand.vmem [shape: bf16[128,128], index: 3, kind: input, shape index: {}]
  %s4 = inlined_call_operand.vmem [shape: f32[1,128], index: 4, kind: input, shape index: {}]
  %s5 = inlined_call_operand.vmem [shape: bf16[128,128], index: 5, kind: input, shape index: {}]
  %s6 = inlined_call_operand.vmem [shape: f32[1,128], index: 6, kind: input, shape index: {}]
  %s7 = inlined_call_operand.vmem [shape: f32[16,128], index: 7, kind: output, shape index: {}]
  %s8 = sld [smem:[#allocation0]]
  $region38: #{mlp_g_forward.1} parent=0
    _
  %s10 = ssub.s32 1, %s8
  %s11 = scalar_select 0, %s10, %s8
  // Predicated region
  $region2: #{mlp_g_forward.1} parent=0 // pred_check
    _
  $region3: #{mlp_g_forward.1} parent=0 // pred_check_branch
    %13 = sbr.rel (0) target = $region5
  $region4: #{mlp_g_forward.1} parent=0 // pred_region
    _
  $region5: #{mlp_g_forward.1} parent=0 // pred_fallthru
    _
  // Predicated region
  $region6: #{mlp_g_forward.1} parent=0 // pred_check
    _
  $region7: #{mlp_g_forward.1} parent=0 // pred_check_branch
    %15 = sbr.rel (0) target = $region9
  $region8: #{mlp_g_forward.1} parent=0 // pred_region
    _
  $region9: #{mlp_g_forward.1} parent=0 // pred_fallthru
    _
  // Predicated region
  $region10: #{mlp_g_forward.1} parent=0 // pred_check
    _
  $region11: #{mlp_g_forward.1} parent=0 // pred_check_branch
    %17 = sbr.rel (0) target = $region13
  $region12: #{mlp_g_forward.1} parent=0 // pred_region
    _
  $region13: #{mlp_g_forward.1} parent=0 // pred_fallthru
    _
  // Predicated region
  $region14: #{mlp_g_forward.1} parent=0 // pred_check
    _
  $region15: #{mlp_g_forward.1} parent=0 // pred_check_branch
    %19 = sbr.rel (0) target = $region17
  $region16: #{mlp_g_forward.1} parent=0 // pred_region
    _
  $region17: #{mlp_g_forward.1} parent=0 // pred_fallthru
    _
  // Predicated region
  $region18: #{mlp_g_forward.1} parent=0 // pred_check
    _
  $region19: #{mlp_g_forward.1} parent=0 // pred_check_branch
    %21 = sbr.rel (0) target = $region21
  $region20: #{mlp_g_forward.1} parent=0 // pred_region
    _
  $region21: #{mlp_g_forward.1} parent=0 // pred_fallthru
    _
  // Predicated region
  $region22: #{mlp_g_forward.1} parent=0 // pred_check
    _
  $region23: #{mlp_g_forward.1} parent=0 // pred_check_branch
    %23 = sbr.rel (0) target = $region25
  $region24: #{mlp_g_forward.1} parent=0 // pred_region
    _
  $region25: #{mlp_g_forward.1} parent=0 // pred_fallthru
    _
  // Predicated region
  $region26: #{mlp_g_forward.1} parent=0 // pred_check
    _
  $region27: #{mlp_g_forward.1} parent=0 // pred_check_branch
    %25 = sbr.rel (0) target = $region29
  $region28: #{mlp_g_forward.1} parent=0 // pred_region
    _
  $region29: #{mlp_g_forward.1} parent=0 // pred_fallthru
    _
  %v27 = vld [vmem:[%s0] sm:$0xf]
  %v28 = vld [vmem:[%s0 + $0x4] sm:$0xf]
  %v29 = vld [vmem:[%s2] sm:$0xf]
  %v30 = vld [vmem:[%s2 + $0x4] sm:$0xf]
  %v31 = vld [vmem:[%s2 + $0x8] sm:$0xf]
  %v32 = vld [vmem:[%s2 + $0xc] sm:$0xf]
  %v33 = vld [vmem:[%s2 + $0x10] sm:$0xf]
  %v34 = vld [vmem:[%s2 + $0x14] sm:$0xf]
  %v35 = vld [vmem:[%s2 + $0x18] sm:$0xf]
  %v36 = vld [vmem:[%s2 + $0x1c] sm:$0xf]
  %v37 = vld [vmem:[%s2 + $0x20] sm:$0xf]
  %v38 = vld [vmem:[%s2 + $0x24] sm:$0xf]
  %v39 = vld [vmem:[%s2 + $0x28] sm:$0xf]
  %v40 = vld [vmem:[%s2 + $0x2c] sm:$0xf]
  %v41 = vld [vmem:[%s2 + $0x30] sm:$0xf]
  %v42 = vld [vmem:[%s2 + $0x34] sm:$0xf]
  %v43 = vld [vmem:[%s2 + $0x38] sm:$0xf]
  %v44 = vld [vmem:[%s2 + $0x3c] sm:$0xf]
  %v45 = vld [vmem:[%s1] sm:$0xf]
  %v46 = vld [vmem:[%s1 + $0x4] sm:$0xf]
  %v47 = vld [vmem:[%s3] sm:$0xf]
  %v48 = vld [vmem:[%s3 + $0x4] sm:$0xf]
  %v49 = vld [vmem:[%s3 + $0x8] sm:$0xf]
  %v50 = vld [vmem:[%s3 + $0xc] sm:$0xf]
  %v51 = vld [vmem:[%s3 + $0x10] sm:$0xf]
  %v52 = vld [vmem:[%s3 + $0x14] sm:$0xf]
  %v53 = vld [vmem:[%s3 + $0x18] sm:$0xf]
  %v54 = vld [vmem:[%s3 + $0x1c] sm:$0xf]
  %v55 = vld [vmem:[%s3 + $0x20] sm:$0xf]
  %v56 = vld [vmem:[%s3 + $0x24] sm:$0xf]
  %v57 = vld [vmem:[%s3 + $0x28] sm:$0xf]
  %v58 = vld [vmem:[%s3 + $0x2c] sm:$0xf]
  %v59 = vld [vmem:[%s3 + $0x30] sm:$0xf]
  %v60 = vld [vmem:[%s3 + $0x34] sm:$0xf]
  %v61 = vld [vmem:[%s3 + $0x38] sm:$0xf]
  %v62 = vld [vmem:[%s3 + $0x3c] sm:$0xf]
  %v65 = vunpack.c.l.b16 %v45
  %v66 = vunpack.c.l.b16 %v46
  %v67 = vpack.c.b16 %v66, %v65
  %v85 = vunpack.c.l.b16 %v47
  %v86 = vunpack.c.l.b16 %v48
  %v87 = vunpack.c.l.b16 %v49
  %v88 = vunpack.c.l.b16 %v50
  %v89 = vunpack.c.l.b16 %v51
  %v90 = vunpack.c.l.b16 %v52
  %v91 = vunpack.c.l.b16 %v53
  %v92 = vunpack.c.l.b16 %v54
  %v93 = vunpack.c.l.b16 %v55
  %v94 = vunpack.c.l.b16 %v56
  %v95 = vunpack.c.l.b16 %v57
  %v96 = vunpack.c.l.b16 %v58
  %v97 = vunpack.c.l.b16 %v59
  %v98 = vunpack.c.l.b16 %v60
  %v99 = vunpack.c.l.b16 %v61
  %v100 = vunpack.c.l.b16 %v62
  %v101 = vpack.c.b16 %v86, %v85
  %v102 = vpack.c.b16 %v88, %v87
  %v103 = vpack.c.b16 %v90, %v89
  %v104 = vpack.c.b16 %v92, %v91
  %v105 = vpack.c.b16 %v94, %v93
  %v106 = vpack.c.b16 %v96, %v95
  %v107 = vpack.c.b16 %v98, %v97
  %v108 = vpack.c.b16 %v100, %v99
  %117 = vmatprep.subr.bf16.mxu0 0
  %118 = vmatpush1.bf16.msra.mxu0 %v108
  %119 = vmatprep.subr.bf16.mxu0 0
  %120 = vmatpush1.bf16.msra.mxu0 %v107
  %121 = vmatprep.subr.bf16.mxu0 0
  %122 = vmatpush1.bf16.msra.mxu0 %v106
  %123 = vmatprep.subr.bf16.mxu0 0
  %124 = vmatpush1.bf16.msra.mxu0 %v105
  %125 = vmatprep.subr.bf16.mxu0 0
  %126 = vmatpush1.bf16.msra.mxu0 %v104
  %127 = vmatprep.subr.bf16.mxu0 0
  %128 = vmatpush1.bf16.msra.mxu0 %v103
  %129 = vmatprep.subr.bf16.mxu0 0
  %130 = vmatpush1.bf16.msra.mxu0 %v102
  %131 = vmatprep.subr.bf16.mxu0 0
  %132 = vmatpush1.bf16.msra.mxu0 %v101
  %133 = vmatprep.subr.bf16.mxu0 0
  %134 = vmatpush2.bf16.msra.mxu0 0
  %135 = vmatprep.subr.bf16.mxu0 0
  %136 = vmatpush2.bf16.msra.mxu0 0
  %137 = vmatprep.subr.bf16.mxu0 0
  %138 = vmatpush2.bf16.msra.mxu0 0
  %139 = vmatprep.subr.bf16.mxu0 0
  %140 = vmatpush2.bf16.msra.mxu0 0
  %141 = vmatprep.subr.bf16.mxu0 0
  %142 = vmatpush2.bf16.msra.mxu0 0
  %143 = vmatprep.subr.bf16.mxu0 0
  %144 = vmatpush2.bf16.msra.mxu0 0
  %145 = vmatprep.subr.bf16.mxu0 0
  %146 = vmatpush2.bf16.msra.mxu0 0
  %147 = vmatprep.subr.bf16.mxu0 0
  %148 = vmatpush2.bf16.msra.mxu0 0
  %149 = vmatprep.mubr.bf16.mxu0 0
  %150 = vmatmul.mubr.bf16.gmra.mxu0 %v67
  %v151 = vpop.f32.mrf.mxu0
  %v152 = vadd.f32 0.0, %v151
  %v153 = vpop.f32.mrf.mxu0
  %v154 = vpop.f32.mrf.mxu0
  %v155 = vadd.f32 0.0, %v154
  %v156 = vpop.f32.mrf.mxu0
  %157 = vdwg.mxu0
  %v160 = vunpack.c.l.b16 %v27
  %v161 = vunpack.c.l.b16 %v28
  %v162 = vpack.c.b16 %v161, %v160
  %v180 = vunpack.c.l.b16 %v29
  %v181 = vunpack.c.l.b16 %v30
  %v182 = vunpack.c.l.b16 %v31
  %v183 = vunpack.c.l.b16 %v32
  %v184 = vunpack.c.l.b16 %v33
  %v185 = vunpack.c.l.b16 %v34
  %v186 = vunpack.c.l.b16 %v35
  %v187 = vunpack.c.l.b16 %v36
  %v188 = vunpack.c.l.b16 %v37
  %v189 = vunpack.c.l.b16 %v38
  %v190 = vunpack.c.l.b16 %v39
  %v191 = vunpack.c.l.b16 %v40
  %v192 = vunpack.c.l.b16 %v41
  %v193 = vunpack.c.l.b16 %v42
  %v194 = vunpack.c.l.b16 %v43
  %v195 = vunpack.c.l.b16 %v44
  %v196 = vpack.c.b16 %v181, %v180
  %v197 = vpack.c.b16 %v183, %v182
  %v198 = vpack.c.b16 %v185, %v184
  %v199 = vpack.c.b16 %v187, %v186
  %v200 = vpack.c.b16 %v189, %v188
  %v201 = vpack.c.b16 %v191, %v190
  %v202 = vpack.c.b16 %v193, %v192
  %v203 = vpack.c.b16 %v195, %v194
  %212 = vmatprep.subr.bf16.mxu0 0
  %213 = vmatpush1.bf16.msra.mxu0 %v203
  %214 = vmatprep.subr.bf16.mxu0 0
  %215 = vmatpush1.bf16.msra.mxu0 %v202
  %216 = vmatprep.subr.bf16.mxu0 0
  %217 = vmatpush1.bf16.msra.mxu0 %v201
  %218 = vmatprep.subr.bf16.mxu0 0
  %219 = vmatpush1.bf16.msra.mxu0 %v200
  %220 = vmatprep.subr.bf16.mxu0 0
  %221 = vmatpush1.bf16.msra.mxu0 %v199
  %222 = vmatprep.subr.bf16.mxu0 0
  %223 = vmatpush1.bf16.msra.mxu0 %v198
  %224 = vmatprep.subr.bf16.mxu0 0
  %225 = vmatpush1.bf16.msra.mxu0 %v197
  %226 = vmatprep.subr.bf16.mxu0 0
  %227 = vmatpush1.bf16.msra.mxu0 %v196
  %228 = vmatprep.subr.bf16.mxu0 0
  %229 = vmatpush2.bf16.msra.mxu0 0
  %230 = vmatprep.subr.bf16.mxu0 0
  %231 = vmatpush2.bf16.msra.mxu0 0
  %232 = vmatprep.subr.bf16.mxu0 0
  %233 = vmatpush2.bf16.msra.mxu0 0
  %234 = vmatprep.subr.bf16.mxu0 0
  %235 = vmatpush2.bf16.msra.mxu0 0
  %236 = vmatprep.subr.bf16.mxu0 0
  %237 = vmatpush2.bf16.msra.mxu0 0
  %238 = vmatprep.subr.bf16.mxu0 0
  %239 = vmatpush2.bf16.msra.mxu0 0
  %240 = vmatprep.subr.bf16.mxu0 0
  %241 = vmatpush2.bf16.msra.mxu0 0
  %242 = vmatprep.subr.bf16.mxu0 0
  %243 = vmatpush2.bf16.msra.mxu0 0
  %244 = vmatprep.mubr.bf16.mxu0 0
  %245 = vmatmul.mubr.bf16.gmra.mxu0 %v162
  %v246 = vpop.f32.mrf.mxu0
  %v247 = vadd.f32 %v152, %v246
  %v248 = vpop.f32.mrf.mxu0
  %v249 = vpop.f32.mrf.mxu0
  %v250 = vadd.f32 %v155, %v249
  %v251 = vpop.f32.mrf.mxu0
  %252 = vdwg.mxu0
  %v253 = vld [vmem:[%s4] sm:$0x1]
  %v255 = vlaneseq
  %v256 = vshrl.u32 %v255, 7
  %v257 = vsub.s32 0, %v256
  %v258 = vrot.slane %v253, %v257
  %v260 = vadd.f32 %v247, %v258
  %v261 = vadd.f32 %v250, %v258
  %vm262 = vcmp.gt.f32.partialorder %v260, 0.0
  %vm263 = vcmp.gt.f32.partialorder %v261, 0.0
  %v264 = vmul.f32 %v260, 0.2
  %v265 = vmul.f32 %v261, 0.2
  %v266 = vsel %vm262, %v260, %v264
  %v267 = vsel %vm263, %v261, %v265
  %v268 = vpack.c.bf16 %v267, %v266
  %v269 = vld [vmem:[%s5] sm:$0xf]
  %v270 = vld [vmem:[%s5 + $0x4] sm:$0xf]
  %v271 = vld [vmem:[%s5 + $0x8] sm:$0xf]
  %v272 = vld [vmem:[%s5 + $0xc] sm:$0xf]
  %v273 = vld [vmem:[%s5 + $0x10] sm:$0xf]
  %v274 = vld [vmem:[%s5 + $0x14] sm:$0xf]
  %v275 = vld [vmem:[%s5 + $0x18] sm:$0xf]
  %v276 = vld [vmem:[%s5 + $0x1c] sm:$0xf]
  %v277 = vld [vmem:[%s5 + $0x20] sm:$0xf]
  %v278 = vld [vmem:[%s5 + $0x24] sm:$0xf]
  %v279 = vld [vmem:[%s5 + $0x28] sm:$0xf]
  %v280 = vld [vmem:[%s5 + $0x2c] sm:$0xf]
  %v281 = vld [vmem:[%s5 + $0x30] sm:$0xf]
  %v282 = vld [vmem:[%s5 + $0x34] sm:$0xf]
  %v283 = vld [vmem:[%s5 + $0x38] sm:$0xf]
  %v284 = vld [vmem:[%s5 + $0x3c] sm:$0xf]
  %v285 = vld [vmem:[%s6] sm:$0x1]
  %v287 = vlaneseq
  %v288 = vshrl.u32 %v287, 7
  %v289 = vsub.s32 0, %v288
  %v290 = vrot.slane %v285, %v289
  %v308 = vunpack.c.l.b16 %v269
  %v309 = vunpack.c.l.b16 %v270
  %v310 = vunpack.c.l.b16 %v271
  %v311 = vunpack.c.l.b16 %v272
  %v312 = vunpack.c.l.b16 %v273
  %v313 = vunpack.c.l.b16 %v274
  %v314 = vunpack.c.l.b16 %v275
  %v315 = vunpack.c.l.b16 %v276
  %v316 = vunpack.c.l.b16 %v277
  %v317 = vunpack.c.l.b16 %v278
  %v318 = vunpack.c.l.b16 %v279
  %v319 = vunpack.c.l.b16 %v280
  %v320 = vunpack.c.l.b16 %v281
  %v321 = vunpack.c.l.b16 %v282
  %v322 = vunpack.c.l.b16 %v283
  %v323 = vunpack.c.l.b16 %v284
  %v324 = vpack.c.b16 %v309, %v308
  %v325 = vpack.c.b16 %v311, %v310
  %v326 = vpack.c.b16 %v313, %v312
  %v327 = vpack.c.b16 %v315, %v314
  %v328 = vpack.c.b16 %v317, %v316
  %v329 = vpack.c.b16 %v319, %v318
  %v330 = vpack.c.b16 %v321, %v320
  %v331 = vpack.c.b16 %v323, %v322
  %340 = vmatprep.subr.bf16.mxu0 0
  %341 = vmatpush1.bf16.msra.mxu0 %v331
  %342 = vmatprep.subr.bf16.mxu0 0
  %343 = vmatpush1.bf16.msra.mxu0 %v330
  %344 = vmatprep.subr.bf16.mxu0 0
  %345 = vmatpush1.bf16.msra.mxu0 %v329
  %346 = vmatprep.subr.bf16.mxu0 0
  %347 = vmatpush1.bf16.msra.mxu0 %v328
  %348 = vmatprep.subr.bf16.mxu0 0
  %349 = vmatpush1.bf16.msra.mxu0 %v327
  %350 = vmatprep.subr.bf16.mxu0 0
  %351 = vmatpush1.bf16.msra.mxu0 %v326
  %352 = vmatprep.subr.bf16.mxu0 0
  %353 = vmatpush1.bf16.msra.mxu0 %v325
  %354 = vmatprep.subr.bf16.mxu0 0
  %355 = vmatpush1.bf16.msra.mxu0 %v324
  %356 = vmatprep.subr.bf16.mxu0 0
  %357 = vmatpush2.bf16.msra.mxu0 0
  %358 = vmatprep.subr.bf16.mxu0 0
  %359 = vmatpush2.bf16.msra.mxu0 0
  %360 = vmatprep.subr.bf16.mxu0 0
  %361 = vmatpush2.bf16.msra.mxu0 0
  %362 = vmatprep.subr.bf16.mxu0 0
  %363 = vmatpush2.bf16.msra.mxu0 0
  %364 = vmatprep.subr.bf16.mxu0 0
  %365 = vmatpush2.bf16.msra.mxu0 0
  %366 = vmatprep.subr.bf16.mxu0 0
  %367 = vmatpush2.bf16.msra.mxu0 0
  %368 = vmatprep.subr.bf16.mxu0 0
  %369 = vmatpush2.bf16.msra.mxu0 0
  %370 = vmatprep.subr.bf16.mxu0 0
  %371 = vmatpush2.bf16.msra.mxu0 0
  %372 = vmatprep.mubr.bf16.mxu0 0
  %373 = vmatmul.mubr.bf16.gmra.mxu0 %v268
  %v374 = vpop.f32.mrf.mxu0
  %v375 = vadd.f32 %v290, %v374
  %v376 = vpop.f32.mrf.mxu0
  %v377 = vpop.f32.mrf.mxu0
  %v378 = vadd.f32 %v290, %v377
  %v379 = vpop.f32.mrf.mxu0
  %380 = vdwg.mxu0
  %v381 = vmax.f32 %v375, 0.0
  %v382 = vmax.f32 %v378, 0.0
  %383 = vst [vmem:[%s7] sm:$0xff] %v381
  %384 = vst [vmem:[%s7 + $0x8] sm:$0xff] %v382
  // Predicated region
  $region30: #{mlp_g_forward.1} parent=0 // pred_check
    _
  $region31: #{mlp_g_forward.1} parent=0 // pred_check_branch
    %386 = sbr.rel (0) target = $region33
  $region32: #{mlp_g_forward.1} parent=0 // pred_region
    _
  $region33: #{mlp_g_forward.1} parent=0 // pred_fallthru
    _
  // Predicated region
  $region34: #{mlp_g_forward.1} parent=0 // pred_check
    _
  $region35: #{mlp_g_forward.1} parent=0 // pred_check_branch
    %388 = sbr.rel (0) target = $region37
  $region36: #{mlp_g_forward.1} parent=0 // pred_region
    _
  $region37: #{mlp_g_forward.1} parent=0 // pred_fallthru
    _

</llo_original>
